<compile_context>
chip_gen: v5e
topology: v5e:2x2
jax: 0.10.0
libtpu: 0.0.40
codegen_flags: <defaults>
</compile_context>

<pallas_src>
import math

import jax
import jax.numpy as jnp
from jax.experimental import pallas as pl
from jax.experimental.pallas import tpu as pltpu

LANES = 128
SUBLANES = 8


def _decompose(n):
    assert n % 2 == 0, f"Feature dimension has to be a multiple of 2, but got {n}"
    e = int(math.log2(n))
    e1 = e // 2
    e2 = e - e // 2
    return 2 ** e1, 2 ** e2


def _gelu_exact(x):
    # PyTorch nn.GELU() default = exact (erf) formulation.
    return 0.5 * x * (1.0 + jax.lax.erf(x * jnp.float32(1.0 / math.sqrt(2.0))))


def _pack_factor(in_f, out_f, lanes=LANES):
    # Smallest g so that g rows packed together are lane-dense for both input and output.
    g = 1
    while (g * in_f) % lanes != 0 or (g * out_f) % lanes != 0:
        g += 1
    return g


def _round_up(a, b):
    return ((a + b - 1) // b) * b


def _des_kernel(x_ref, w1_ref, b1_ref, w2_ref, b2_ref, o_ref):
    # x_ref: (tr, win)      w1_ref: (L1, L1)  -- one block-diagonal chunk of proj_right
    # b1_ref: (1, L1)       w2_ref: (win, wout)   b2_ref: (1, wout)   o_ref: (tr, wout)
    L1 = w1_ref.shape[0]
    win = x_ref.shape[1]
    nchunks = win // L1

    w1 = w1_ref[...]
    b1 = b1_ref[...]

    y = None
    for c in range(nchunks):                       # static unroll over lane chunks
        x_c = x_ref[:, c * L1:(c + 1) * L1].astype(w1.dtype)
        z_c = jnp.dot(x_c, w1, preferred_element_type=jnp.float32) + b1
        a_c = _gelu_exact(z_c).astype(w2_ref.dtype)
        y_c = jnp.dot(a_c, w2_ref[c * L1:(c + 1) * L1, :],
                      preferred_element_type=jnp.float32)
        y = y_c if y is None else y + y_c

    o_ref[...] = (y + b2_ref[...]).astype(o_ref.dtype)


def des_forward(x, wr, br, wl, bl, *, in_features, out_features,
                tile_rows=8192, matmul_dtype=None,
                vmem_budget_bytes=26 * 1024 * 1024):
    _, p = _decompose(min(in_features, out_features))
    k_in = in_features // p
    k_out = out_features // p
    assert wr.shape == (p, p) and wl.shape == (k_out, k_in)

    batch_shape = x.shape[:-1]
    n = math.prod(batch_shape) if batch_shape else 1

    g = _pack_factor(in_features, out_features)
    win = g * in_features
    wout = g * out_features

    mat_dtype = jnp.dtype(matmul_dtype) if matmul_dtype is not None else jnp.dtype(x.dtype)

    # ---- Lane-chunk width for the block-diagonal proj_right weight ----
    if win > 256 and win % 256 == 0 and 256 % p == 0:
        L1 = 256          # wider presentation for v6e/v7x 256-wide MXUs
    elif win > 128 and win % 128 == 0 and 128 % p == 0:
        L1 = 128
    else:
        L1 = win

    # ---- Kronecker-expanded weights & lane-wide biases (wrapper side, tiny) ----
    wr32 = wr.astype(jnp.float32)
    wl32 = wl.astype(jnp.float32)
    w1 = jnp.kron(jnp.eye(L1 // p, dtype=jnp.float32), wr32.T).astype(mat_dtype)   # (L1, L1)
    w2 = jnp.kron(jnp.eye(g, dtype=jnp.float32),
                  jnp.kron(wl32.T, jnp.eye(p, dtype=jnp.float32))).astype(mat_dtype)  # (win, wout)
    b1 = jnp.tile(br.astype(jnp.float32), L1 // p).reshape(1, L1)
    b2 = jnp.tile(jnp.repeat(bl.astype(jnp.float32), p), g).reshape(1, wout)

    # ---- Lane-dense packing; pad only to the packing/sublane granularity (8*g rows) ----
    x2 = x.reshape(n, in_features)
    n_padded = _round_up(max(n, 1), SUBLANES * g)
    if n_padded != n:
        x2 = jnp.pad(x2, ((0, n_padded - n), (0, 0)))
    rows = n_padded // g
    xp = x2.reshape(rows, win)                     # free row-major reinterpretation

    # ---- Row-tile from an explicit VMEM budget ----
    x_item = jnp.dtype(x.dtype).itemsize
    w_item = mat_dtype.itemsize
    weight_bytes = (L1 * L1 + win * wout) * w_item + (L1 + wout) * 4
    # double-buffered x/out tiles + f32 intermediates (z, a, y accumulator)
    per_row_bytes = 2 * (win + wout) * x_item + (2 * L1 + wout) * 4
    tr = (vmem_budget_bytes - 2 * weight_bytes) // per_row_bytes
    tr = max(SUBLANES, min(int(tr), int(tile_rows), rows))
    tr = (tr // SUBLANES) * SUBLANES
    grid = (pl.cdiv(rows, tr),)

    vmem_limit = int(min(100 * 1024 * 1024,
                         max(32 * 1024 * 1024,
                             2 * weight_bytes + tr * per_row_bytes + (8 << 20))))

    cost = pl.CostEstimate(
        flops=2 * rows * win * (L1 + wout),
        transcendentals=rows * win,
        bytes_accessed=rows * (win + wout) * x_item + weight_bytes,
    )

    out_shape = jax.ShapeDtypeStruct((rows, wout), x.dtype)

    def _make_call(single_buffer_invariants):
        inv_kw = {"pipeline_mode": pl.Buffered(1)} if single_buffer_invariants else {}
        in_specs = [
            pl.BlockSpec((tr, win), lambda i: (i, 0)),
            pl.BlockSpec((L1, L1), lambda i: (0, 0), **inv_kw),    # weights stay VMEM-resident
            pl.BlockSpec((1, L1), lambda i: (0, 0), **inv_kw),
            pl.BlockSpec((win, wout), lambda i: (0, 0), **inv_kw),
            pl.BlockSpec((1, wout), lambda i: (0, 0), **inv_kw),
        ]
        return pl.pallas_call(
            _des_kernel,
            out_shape=out_shape,
            grid_spec=pltpu.PrefetchScalarGridSpec(
                num_scalar_prefetch=0,
                grid=grid,
                in_specs=in_specs,
                out_specs=pl.BlockSpec((tr, wout), lambda i: (i, 0)),
            ),
            compiler_params=pltpu.CompilerParams(
                dimension_semantics=("parallel",),
                vmem_limit_bytes=vmem_limit),
            cost_estimate=cost,
        )

    try:
        out_p = _make_call(True)(xp, w1, b1, w2, b2)
    except Exception:
        # Fallback if this JAX build rejects Buffered(1): double-buffering the small
        # invariant operands is still correct, just wastes a little VMEM.
        out_p = _make_call(False)(xp, w1, b1, w2, b2)

    out = out_p.reshape(n_padded, out_features)[:n]
    return out.reshape(*batch_shape, out_features)


def des_reference(x, wr, br, wl, bl, *, in_features, out_features):
    # Pure-JAX reference mirroring the PyTorch forward exactly.
    _, p = _decompose(min(in_features, out_features))
    k_in = in_features // p
    batch_shape = x.shape[:-1]
    xr = x.reshape(*batch_shape, k_in, p)
    z = jnp.einsum("...ip,qp->...iq", xr, wr) + br            # proj_right
    z = jnp.swapaxes(z, -1, -2)                               # transpose(-1,-2)
    a = _gelu_exact(z)                                        # GELU (exact erf)
    y = jnp.einsum("...pi,oi->...po", a, wl) + bl             # proj_left
    y = jnp.swapaxes(y, -1, -2)                               # transpose(-1,-2)
    return y.reshape(*batch_shape, -1)                        # flatten(-2,-1)


if __name__ == "__main__":
    # in_features = out_features = 32 -> _decompose(32) = (4, 8): p = 8, k_in = k_out = 4.
    in_features = 32
    out_features = 32
    _, p = _decompose(min(in_features, out_features))
    k_in = in_features // p
    k_out = out_features // p

    key = jax.random.PRNGKey(0)
    kx, kwr, kbr, kwl, kbl, kx2, kx3 = jax.random.split(key, 7)

    # Deterministic synthetic parameters (same shapes as nn.Linear weights/biases).
    wr = jax.random.normal(kwr, (p, p), dtype=jnp.float32) * 0.1         # proj_right.weight
    br = jax.random.normal(kbr, (p,), dtype=jnp.float32) * 0.1           # proj_right.bias
    wl = jax.random.normal(kwl, (k_out, k_in), dtype=jnp.float32) * 0.1  # proj_left.weight
    bl = jax.random.normal(kbl, (k_out,), dtype=jnp.float32) * 0.1       # proj_left.bias

    # Main check: (B, L, C) token-major layout, no padding path (n % 8g == 0).
    B, L = 2, 16
    x = jax.random.normal(kx, (B, L, in_features), dtype=jnp.float32)
    out = des_forward(x, wr, br, wl, bl,
                      in_features=in_features, out_features=out_features)
    out = jax.block_until_ready(out)
    ref = des_reference(x, wr, br, wl, bl,
                        in_features=in_features, out_features=out_features)
    assert out.shape == (B, L, out_features)
    assert jnp.allclose(out, ref, atol=1e-5, rtol=1e-5), "Pallas kernel mismatch vs reference"

    # Second check: awkward batch shape exercising the (small) packing-pad / trim path.
    x_b = jax.random.normal(kx2, (3, 7, in_features), dtype=jnp.float32)
    out_b = des_forward(x_b, wr, br, wl, bl,
                        in_features=in_features, out_features=out_features)
    out_b = jax.block_until_ready(out_b)
    ref_b = des_reference(x_b, wr, br, wl, bl,
                          in_features=in_features, out_features=out_features)
    assert out_b.shape == (3, 7, out_features)
    assert jnp.allclose(out_b, ref_b, atol=1e-5, rtol=1e-5), "Pallas kernel mismatch (padded path)"

    # Third check: ragged last grid block (rows not divisible by the row tile).
    x_c = jax.random.normal(kx3, (1, 136, in_features), dtype=jnp.float32)
    out_c = des_forward(x_c, wr, br, wl, bl,
                        in_features=in_features, out_features=out_features, tile_rows=16)
    out_c = jax.block_until_ready(out_c)
    ref_c = des_reference(x_c, wr, br, wl, bl,
                          in_features=in_features, out_features=out_features)
    assert out_c.shape == (1, 136, out_features)
    assert jnp.allclose(out_c, ref_c, atol=1e-5, rtol=1e-5), "Pallas kernel mismatch (ragged grid)"

    print("KERNEL_OK")
</pallas_src>

<mosaic_0001>
module attributes {stable_mosaic.version = 11 : i64} {
  func.func @_des_kernel(%arg0: i32, %arg1: memref<8x128xf32, #tpu.memory_space<vmem>>, %arg2: memref<128x128xf32, #tpu.memory_space<vmem>>, %arg3: memref<1x128xf32, #tpu.memory_space<vmem>>, %arg4: memref<128x128xf32, #tpu.memory_space<vmem>>, %arg5: memref<1x128xf32, #tpu.memory_space<vmem>>, %arg6: memref<8x128xf32, #tpu.memory_space<vmem>>) attributes {dimension_semantics = [#tpu.dimension_semantics<parallel>], iteration_bounds = array<i64: 1>, scalar_prefetch = 0 : i64, scratch_operands = 0 : i64, tpu.core_type = #tpu.core_type<tc>, window_params = [{transform_indices = @transform_0, window_bounds = array<i64: 8, 128>}, {pipeline_mode = #tpu.pipeline_mode<synchronous>, transform_indices = @transform_1, window_bounds = array<i64: 128, 128>}, {pipeline_mode = #tpu.pipeline_mode<synchronous>, transform_indices = @transform_2, window_bounds = array<i64: 1, 128>}, {pipeline_mode = #tpu.pipeline_mode<synchronous>, transform_indices = @transform_3, window_bounds = array<i64: 128, 128>}, {pipeline_mode = #tpu.pipeline_mode<synchronous>, transform_indices = @transform_4, window_bounds = array<i64: 1, 128>}, {transform_indices = @transform_5, window_bounds = array<i64: 8, 128>}]} {
    %c0 = arith.constant 0 : index
    %c0_0 = arith.constant 0 : index
    %0 = vector.load %arg2[%c0, %c0_0] : memref<128x128xf32, #tpu.memory_space<vmem>>, vector<128x128xf32>
    %c0_1 = arith.constant 0 : index
    %c0_2 = arith.constant 0 : index
    %1 = vector.load %arg3[%c0_1, %c0_2] : memref<1x128xf32, #tpu.memory_space<vmem>>, vector<1x128xf32>
    %c0_3 = arith.constant 0 : index
    %c0_4 = arith.constant 0 : index
    %2 = vector.load %arg1[%c0_3, %c0_4] : memref<8x128xf32, #tpu.memory_space<vmem>>, vector<8x128xf32>
    %cst = arith.constant dense<0.000000e+00> : vector<8x128xf32>
    %3 = tpu.matmul %2, %0, %cst {dimension_numbers = #tpu.dot_dimension_numbers<[1], [0], [0], [1], [0, 0, 1, 1], [], []>} : vector<8x128xf32>, vector<128x128xf32>, vector<8x128xf32> -> vector<8x128xf32>
    %4 = vector.broadcast %1 : vector<1x128xf32> to vector<8x128xf32>
    %5 = arith.addf %3, %4 : vector<8x128xf32>
    %cst_5 = arith.constant 5.000000e-01 : f32
    %6 = vector.broadcast %cst_5 : f32 to vector<8x128xf32>
    %7 = arith.mulf %6, %5 : vector<8x128xf32>
    %cst_6 = arith.constant 0.707106769 : f32
    %8 = vector.broadcast %cst_6 : f32 to vector<8x128xf32>
    %9 = arith.mulf %5, %8 : vector<8x128xf32>
    %10 = math.erf %9 : vector<8x128xf32>
    %cst_7 = arith.constant 1.000000e+00 : f32
    %11 = vector.broadcast %cst_7 : f32 to vector<8x128xf32>
    %12 = arith.addf %11, %10 : vector<8x128xf32>
    %13 = arith.mulf %7, %12 : vector<8x128xf32>
    %c0_8 = arith.constant 0 : index
    %c0_9 = arith.constant 0 : index
    %14 = vector.load %arg4[%c0_8, %c0_9] : memref<128x128xf32, #tpu.memory_space<vmem>>, vector<128x128xf32>
    %cst_10 = arith.constant dense<0.000000e+00> : vector<8x128xf32>
    %15 = tpu.matmul %13, %14, %cst_10 {dimension_numbers = #tpu.dot_dimension_numbers<[1], [0], [0], [1], [0, 0, 1, 1], [], []>} : vector<8x128xf32>, vector<128x128xf32>, vector<8x128xf32> -> vector<8x128xf32>
    %c0_11 = arith.constant 0 : index
    %c0_12 = arith.constant 0 : index
    %16 = vector.load %arg5[%c0_11, %c0_12] : memref<1x128xf32, #tpu.memory_space<vmem>>, vector<1x128xf32>
    %17 = vector.broadcast %16 : vector<1x128xf32> to vector<8x128xf32>
    %18 = arith.addf %15, %17 : vector<8x128xf32>
    %c0_13 = arith.constant 0 : index
    %c0_14 = arith.constant 0 : index
    %19 = vector.load %arg6[%c0_13, %c0_14] : memref<8x128xf32, #tpu.memory_space<vmem>>, vector<8x128xf32>
    tpu.vector_store %arg6[%c0_13, %c0_14], %18 {strides = array<i32>} : memref<8x128xf32, #tpu.memory_space<vmem>>, vector<8x128xf32>,
    return
  }
  func.func @transform_0(%arg0: i32) -> (i32, i32) {
    %c0_i32 = arith.constant 0 : i32
    %c0_i32_0 = arith.constant 0 : i32
    return %arg0, %c0_i32 : i32, i32
  }
  func.func @transform_1(%arg0: i32) -> (i32, i32) {
    %c0_i32 = arith.constant 0 : i32
    %c0_i32_0 = arith.constant 0 : i32
    %c0_i32_1 = arith.constant 0 : i32
    return %c0_i32, %c0_i32_0 : i32, i32
  }
  func.func @transform_2(%arg0: i32) -> (i32, i32) {
    %c0_i32 = arith.constant 0 : i32
    %c0_i32_0 = arith.constant 0 : i32
    %c0_i32_1 = arith.constant 0 : i32
    return %c0_i32, %c0_i32_0 : i32, i32
  }
  func.func @transform_3(%arg0: i32) -> (i32, i32) {
    %c0_i32 = arith.constant 0 : i32
    %c0_i32_0 = arith.constant 0 : i32
    %c0_i32_1 = arith.constant 0 : i32
    return %c0_i32, %c0_i32_0 : i32, i32
  }
  func.func @transform_4(%arg0: i32) -> (i32, i32) {
    %c0_i32 = arith.constant 0 : i32
    %c0_i32_0 = arith.constant 0 : i32
    %c0_i32_1 = arith.constant 0 : i32
    return %c0_i32, %c0_i32_0 : i32, i32
  }
  func.func @transform_5(%arg0: i32) -> (i32, i32) {
    %c0_i32 = arith.constant 0 : i32
    %c0_i32_0 = arith.constant 0 : i32
    return %arg0, %c0_i32 : i32, i32
  }
}

module attributes {stable_mosaic.version = 11 : i64} {
  func.func @_des_kernel(%arg0: i32, %arg1: memref<8x128xf32, #tpu.memory_space<vmem>>, %arg2: memref<128x128xf32, #tpu.memory_space<vmem>>, %arg3: memref<1x128xf32, #tpu.memory_space<vmem>>, %arg4: memref<128x128xf32, #tpu.memory_space<vmem>>, %arg5: memref<1x128xf32, #tpu.memory_space<vmem>>, %arg6: memref<8x128xf32, #tpu.memory_space<vmem>>) attributes {dimension_semantics = [#tpu.dimension_semantics<parallel>], iteration_bounds = array<i64: 1>, scalar_prefetch = 0 : i64, scratch_operands = 0 : i64, tpu.core_type = #tpu.core_type<tc>, window_params = [{transform_indices = @transform_0, window_bounds = array<i64: 8, 128>}, {pipeline_mode = #tpu.pipeline_mode<synchronous>, transform_indices = @transform_1, window_bounds = array<i64: 128, 128>}, {pipeline_mode = #tpu.pipeline_mode<synchronous>, transform_indices = @transform_2, window_bounds = array<i64: 1, 128>}, {pipeline_mode = #tpu.pipeline_mode<synchronous>, transform_indices = @transform_3, window_bounds = array<i64: 128, 128>}, {pipeline_mode = #tpu.pipeline_mode<synchronous>, transform_indices = @transform_4, window_bounds = array<i64: 1, 128>}, {transform_indices = @transform_5, window_bounds = array<i64: 8, 128>}]} {
    %c0 = arith.constant 0 : index
    %c0_0 = arith.constant 0 : index
    %0 = vector.load %arg2[%c0, %c0_0] : memref<128x128xf32, #tpu.memory_space<vmem>>, vector<128x128xf32>
    %c0_1 = arith.constant 0 : index
    %c0_2 = arith.constant 0 : index
    %1 = vector.load %arg3[%c0_1, %c0_2] : memref<1x128xf32, #tpu.memory_space<vmem>>, vector<1x128xf32>
    %c0_3 = arith.constant 0 : index
    %c0_4 = arith.constant 0 : index
    %2 = vector.load %arg1[%c0_3, %c0_4] : memref<8x128xf32, #tpu.memory_space<vmem>>, vector<8x128xf32>
    %cst = arith.constant dense<0.000000e+00> : vector<8x128xf32>
    %3 = tpu.matmul %2, %0, %cst {dimension_numbers = #tpu.dot_dimension_numbers<[1], [0], [0], [1], [0, 0, 1, 1], [], []>} : vector<8x128xf32>, vector<128x128xf32>, vector<8x128xf32> -> vector<8x128xf32>
    %4 = vector.broadcast %1 : vector<1x128xf32> to vector<8x128xf32>
    %5 = arith.addf %3, %4 : vector<8x128xf32>
    %cst_5 = arith.constant 5.000000e-01 : f32
    %6 = vector.broadcast %cst_5 : f32 to vector<8x128xf32>
    %7 = arith.mulf %6, %5 : vector<8x128xf32>
    %cst_6 = arith.constant 0.707106769 : f32
    %8 = vector.broadcast %cst_6 : f32 to vector<8x128xf32>
    %9 = arith.mulf %5, %8 : vector<8x128xf32>
    %10 = math.erf %9 : vector<8x128xf32>
    %cst_7 = arith.constant 1.000000e+00 : f32
    %11 = vector.broadcast %cst_7 : f32 to vector<8x128xf32>
    %12 = arith.addf %11, %10 : vector<8x128xf32>
    %13 = arith.mulf %7, %12 : vector<8x128xf32>
    %c0_8 = arith.constant 0 : index
    %c0_9 = arith.constant 0 : index
    %14 = vector.load %arg4[%c0_8, %c0_9] : memref<128x128xf32, #tpu.memory_space<vmem>>, vector<128x128xf32>
    %cst_10 = arith.constant dense<0.000000e+00> : vector<8x128xf32>
    %15 = tpu.matmul %13, %14, %cst_10 {dimension_numbers = #tpu.dot_dimension_numbers<[1], [0], [0], [1], [0, 0, 1, 1], [], []>} : vector<8x128xf32>, vector<128x128xf32>, vector<8x128xf32> -> vector<8x128xf32>
    %c0_11 = arith.constant 0 : index
    %c0_12 = arith.constant 0 : index
    %16 = vector.load %arg5[%c0_11, %c0_12] : memref<1x128xf32, #tpu.memory_space<vmem>>, vector<1x128xf32>
    %17 = vector.broadcast %16 : vector<1x128xf32> to vector<8x128xf32>
    %18 = arith.addf %15, %17 : vector<8x128xf32>
    %c0_13 = arith.constant 0 : index
    %c0_14 = arith.constant 0 : index
    %19 = vector.load %arg6[%c0_13, %c0_14] : memref<8x128xf32, #tpu.memory_space<vmem>>, vector<8x128xf32>
    tpu.vector_store %arg6[%c0_13, %c0_14], %18 {strides = array<i32>} : memref<8x128xf32, #tpu.memory_space<vmem>>, vector<8x128xf32>,
    return
  }
  func.func @transform_0(%arg0: i32) -> (i32, i32) {
    %c0_i32 = arith.constant 0 : i32
    %c0_i32_0 = arith.constant 0 : i32
    return %arg0, %c0_i32 : i32, i32
  }
  func.func @transform_1(%arg0: i32) -> (i32, i32) {
    %c0_i32 = arith.constant 0 : i32
    %c0_i32_0 = arith.constant 0 : i32
    %c0_i32_1 = arith.constant 0 : i32
    return %c0_i32, %c0_i32_0 : i32, i32
  }
  func.func @transform_2(%arg0: i32) -> (i32, i32) {
    %c0_i32 = arith.constant 0 : i32
    %c0_i32_0 = arith.constant 0 : i32
    %c0_i32_1 = arith.constant 0 : i32
    return %c0_i32, %c0_i32_0 : i32, i32
  }
  func.func @transform_3(%arg0: i32) -> (i32, i32) {
    %c0_i32 = arith.constant 0 : i32
    %c0_i32_0 = arith.constant 0 : i32
    %c0_i32_1 = arith.constant 0 : i32
    return %c0_i32, %c0_i32_0 : i32, i32
  }
  func.func @transform_4(%arg0: i32) -> (i32, i32) {
    %c0_i32 = arith.constant 0 : i32
    %c0_i32_0 = arith.constant 0 : i32
    %c0_i32_1 = arith.constant 0 : i32
    return %c0_i32, %c0_i32_0 : i32, i32
  }
  func.func @transform_5(%arg0: i32) -> (i32, i32) {
    %c0_i32 = arith.constant 0 : i32
    %c0_i32_0 = arith.constant 0 : i32
    return %arg0, %c0_i32 : i32, i32
  }
}

</mosaic_0001>

<llo_original>
// kernel: tpu_custom_call.1
$region0: #{tpu_custom_call.1}
  #allocation0 [shape = 'u32[]', space=smem, size = 0x4, offset = 0x4, fixed_abs, tag = 'smem constant byte address 0x4 - core index']
  #allocation1 [shape = 'u32[72,128]{1,0:T(1,128)}', space=vmem, size = 0x9000, scoped, tag = 'internal scratch']
  %s0 = inlined_call_operand.hbm [shape: f32[8,128], index: 0, kind: input, shape index: {}]
  %s1 = inlined_call_operand.hbm [shape: f32[128,128], index: 1, kind: input, shape index: {}]
  %s2 = inlined_call_operand.vmem [shape: f32[1,128], index: 2, kind: input, shape index: {}]
  %s3 = inlined_call_operand.hbm [shape: f32[128,128], index: 3, kind: input, shape index: {}]
  %s4 = inlined_call_operand.vmem [shape: f32[1,128], index: 4, kind: input, shape index: {}]
  %s5 = inlined_call_operand.hbm [shape: f32[8,128], index: 5, kind: output, shape index: {}]
  %s6 = sld [smem:[#allocation0]]
  $region42: #{tpu_custom_call.1} parent=0
    _
  %s8 = ssub.s32 1, %s6
  %s9 = scalar_select 0, %s8, %s6
  $region1: #{tpu_custom_call.1} parent=0
    #allocation2 [shape = 'u8[4096]{0}', space=vmem, size = 0x1000, scoped, tag = 'input window, operand 0, single buffered']
    #allocation3 [shape = 's32[1]{0}', space=sflag, size = 0x4, scoped, tag = 'scoped memory for tpu_custom_call.1']
    #allocation4 [shape = 's32[1]{0}', space=sflag, size = 0x4, scoped, tag = 'scoped memory for tpu_custom_call.1']
    #allocation5 [shape = 'u8[65536]{0}', space=vmem, size = 0x10000, scoped, tag = 'input window, operand 1, single buffered']
    #allocation6 [shape = 's32[1]{0}', space=sflag, size = 0x4, scoped, tag = 'scoped memory for tpu_custom_call.1']
    #allocation7 [shape = 'u8[65536]{0}', space=vmem, size = 0x10000, scoped, tag = 'input window, operand 3, single buffered']
    #allocation8 [shape = 'u8[4096]{0}', space=vmem, size = 0x1000, scoped, tag = 'output window, operand 0, single buffered']
    %10 = vsyncpa [#allocation3], 0
    %11 = vsyncpa [#allocation6], 0
    %12 = vsyncpa [#allocation4], 0
    // Predicated region
    $region2: #{tpu_custom_call.1} parent=1 // pred_check
      _
    $region3: #{tpu_custom_call.1} parent=1 // pred_check_branch
      %14 = sbr.rel (0) target = $region5
    $region4: #{tpu_custom_call.1} parent=1 // pred_region
      %16 = vsyncadd [#allocation3], 0
      %s18 = sshll.u32 %s0, 4
      %s19 = int_to_ptr.hbm [resolvable:$true] %s18
      %s20 = sshll.u32 [#allocation2], 4
      %s21 = int_to_ptr.vmem [resolvable:$true] %s20
      %23 = dma.hbm_to_vmem [thread:$0]  %s19, 128, %s21, [#allocation3]
    $region5: #{tpu_custom_call.1} parent=1 // pred_fallthru
      _
    // Predicated region
    $region6: #{tpu_custom_call.1} parent=1 // pred_check
      _
    $region7: #{tpu_custom_call.1} parent=1 // pred_check_branch
      %25 = sbr.rel (0) target = $region9
    $region8: #{tpu_custom_call.1} parent=1 // pred_region
      %27 = vsyncadd [#allocation6], 0
      %s28 = sshll.u32 %s1, 4
      %s29 = int_to_ptr.hbm [resolvable:$true] %s28
      %s30 = sshll.u32 [#allocation5], 4
      %s31 = int_to_ptr.vmem [resolvable:$true] %s30
      %36 = dma.hbm_to_vmem [thread:$0]  %s29, 2048, %s31, [#allocation6], 128, 128, 8
    $region9: #{tpu_custom_call.1} parent=1 // pred_fallthru
      _
    // Predicated region
    $region10: #{tpu_custom_call.1} parent=1 // pred_check
      _
    $region11: #{tpu_custom_call.1} parent=1 // pred_check_branch
      %38 = sbr.rel (0) target = $region13
    $region12: #{tpu_custom_call.1} parent=1 // pred_region
      _
    $region13: #{tpu_custom_call.1} parent=1 // pred_fallthru
      _
    // Predicated region
    $region14: #{tpu_custom_call.1} parent=1 // pred_check
      _
    $region15: #{tpu_custom_call.1} parent=1 // pred_check_branch
      %40 = sbr.rel (0) target = $region17
    $region16: #{tpu_custom_call.1} parent=1 // pred_region
      %42 = vsyncadd [#allocation6], 0
      %s43 = sshll.u32 %s3, 4
      %s44 = int_to_ptr.hbm [resolvable:$true] %s43
      %s45 = sshll.u32 [#allocation7], 4
      %s46 = int_to_ptr.vmem [resolvable:$true] %s45
      %51 = dma.hbm_to_vmem [thread:$0]  %s44, 2048, %s46, [#allocation6], 128, 128, 8
    $region17: #{tpu_custom_call.1} parent=1 // pred_fallthru
      _
    // Predicated region
    $region18: #{tpu_custom_call.1} parent=1 // pred_check
      _
    $region19: #{tpu_custom_call.1} parent=1 // pred_check_branch
      %53 = sbr.rel (0) target = $region21
    $region20: #{tpu_custom_call.1} parent=1 // pred_region
      _
    $region21: #{tpu_custom_call.1} parent=1 // pred_fallthru
      _
    // Predicated region
    $region22: #{tpu_custom_call.1} parent=1 // pred_check
      _
    $region23: #{tpu_custom_call.1} parent=1 // pred_check_branch
      %55 = sbr.rel (0) target = $region25
    $region24: #{tpu_custom_call.1} parent=1 // pred_region
      %57 = dma.done [#allocation3], 128
    $region25: #{tpu_custom_call.1} parent=1 // pred_fallthru
      _
    // Predicated region
    $region26: #{tpu_custom_call.1} parent=1 // pred_check
      _
    $region27: #{tpu_custom_call.1} parent=1 // pred_check_branch
      %59 = sbr.rel (0) target = $region29
    $region28: #{tpu_custom_call.1} parent=1 // pred_region
      %61 = dma.done [#allocation6], 2048
    $region29: #{tpu_custom_call.1} parent=1 // pred_fallthru
      _
    // Predicated region
    $region30: #{tpu_custom_call.1} parent=1 // pred_check
      _
    $region31: #{tpu_custom_call.1} parent=1 // pred_check_branch
      %63 = sbr.rel (0) target = $region33
    $region32: #{tpu_custom_call.1} parent=1 // pred_region
      %65 = dma.done [#allocation6], 2048
    $region33: #{tpu_custom_call.1} parent=1 // pred_fallthru
      _
    %v66 = vld [vmem:[#allocation5] sm:$0xff]
    %v67 = vld [vmem:[#allocation5 + $0x8] sm:$0xff]
    %v68 = vld [vmem:[#allocation5 + $0x10] sm:$0xff]
    %v69 = vld [vmem:[#allocation5 + $0x18] sm:$0xff]
    %v70 = vld [vmem:[#allocation5 + $0x20] sm:$0xff]
    %v71 = vld [vmem:[#allocation5 + $0x28] sm:$0xff]
    %v72 = vld [vmem:[#allocation5 + $0x30] sm:$0xff]
    %v73 = vld [vmem:[#allocation5 + $0x38] sm:$0xff]
    %v74 = vld [vmem:[#allocation5 + $0x40] sm:$0xff]
    %v75 = vld [vmem:[#allocation5 + $0x48] sm:$0xff]
    %v76 = vld [vmem:[#allocation5 + $0x50] sm:$0xff]
    %v77 = vld [vmem:[#allocation5 + $0x58] sm:$0xff]
    %v78 = vld [vmem:[#allocation5 + $0x60] sm:$0xff]
    %v79 = vld [vmem:[#allocation5 + $0x68] sm:$0xff]
    %v80 = vld [vmem:[#allocation5 + $0x70] sm:$0xff]
    %v81 = vld [vmem:[#allocation5 + $0x78] sm:$0xff]
    %v82 = vld [vmem:[%s2] sm:$0x1]
    %v83 = vld [vmem:[#allocation2] sm:$0xff]
    %v85 = vperm.slane %v82, 0
    %87 = vmatpush.msra.mxu0 %v81
    %88 = vmatpush.msra.mxu0 %v80
    %89 = vmatpush.msra.mxu0 %v79
    %90 = vmatpush.msra.mxu0 %v78
    %91 = vmatpush.msra.mxu0 %v77
    %92 = vmatpush.msra.mxu0 %v76
    %93 = vmatpush.msra.mxu0 %v75
    %94 = vmatpush.msra.mxu0 %v74
    %95 = vmatpush.msra.mxu0 %v73
    %96 = vmatpush.msra.mxu0 %v72
    %97 = vmatpush.msra.mxu0 %v71
    %98 = vmatpush.msra.mxu0 %v70
    %99 = vmatpush.msra.mxu0 %v69
    %100 = vmatpush.msra.mxu0 %v68
    %101 = vmatpush.msra.mxu0 %v67
    %102 = vmatpush.msra.mxu0 %v66
    %103 = vmatmul.f32.gmra.mxu0 %v83
    %v104 = vpop.f32.mrf.mxu0
    %v105 = vadd.f32 %v85, %v104
    %106 = vdwg.mxu0
    %v107 = vmul.f32 %v105, 0.5
    %v108 = vmul.f32 %v105, 0.70710677
    %v109 = vmul.f32 %v108, %v108
    %v110 = vmin.f32 16.0, %v109
    %v111 = vmul.f32 %v110, 2.1237322e-06
    %v112 = vadd.f32 %v111, 0.00028619796
    %v113 = vmul.f32 %v110, %v112
    %v114 = vadd.f32 %v113, 0.0036580483
    %v115 = vmul.f32 %v110, %v114
    %v116 = vadd.f32 %v115, 0.05243302
    %v117 = vmul.f32 %v110, %v116
    %v118 = vadd.f32 %v117, 0.18741608
    %v119 = vmul.f32 %v110, %v118
    %v120 = vadd.f32 %v119, 1.1283791
    %v121 = vmul.f32 %v108, %v120
    %v122 = vmul.f32 %v110, 3.8918573e-05
    %v123 = vadd.f32 %v122, 0.001143296
    %v124 = vmul.f32 %v110, %v123
    %v125 = vadd.f32 %v124, 0.014752088
    %v126 = vmul.f32 %v110, %v125
    %v127 = vadd.f32 %v126, 0.112945676
    %v128 = vmul.f32 %v110, %v127
    %v129 = vadd.f32 %v128, 0.4994258
    %v130 = vmul.f32 %v110, %v129
    %v131 = vadd.f32 %v130, 1.0
    %v132 = vrcp.pop %v131
    %v133 = vmul.f32 %v131, %v132
    %v134 = vsub.f32 1.0, %v133
    %v135 = vmul.f32 %v132, %v134
    %v136 = vadd.f32 %v132, %v135
    %vm137 = vweird.f32 %v131
    %vm138 = vweird.f32 %v132
    %vm139 = vmor %vm137, %vm138
    %v140 = vsel %vm139, %v132, %v136
    %v141 = vand.u32 2147483647, %v131
    %vm142 = vcmp.eq.f32.partialorder %v141, 8.507059e+37
    %v143 = vand.u32 %v131, 2147483648
    %v144 = vor.u32 1.1754944e-38, %v143
    %v145 = vsel %vm142, %v144, %v140
    %v146 = vmul.f32 %v121, %v145
    %v147 = vmin.f32 %v146, 1.0
    %v148 = vmax.f32 %v147, -1.0
    %v149 = vadd.f32 %v148, 1.0
    %v150 = vmul.f32 %v107, %v149
    %v151 = vld [vmem:[#allocation7] sm:$0xff]
    %v152 = vld [vmem:[#allocation7 + $0x8] sm:$0xff]
    %v153 = vld [vmem:[#allocation7 + $0x10] sm:$0xff]
    %v154 = vld [vmem:[#allocation7 + $0x18] sm:$0xff]
    %v155 = vld [vmem:[#allocation7 + $0x20] sm:$0xff]
    %v156 = vld [vmem:[#allocation7 + $0x28] sm:$0xff]
    %v157 = vld [vmem:[#allocation7 + $0x30] sm:$0xff]
    %v158 = vld [vmem:[#allocation7 + $0x38] sm:$0xff]
    %v159 = vld [vmem:[#allocation7 + $0x40] sm:$0xff]
    %v160 = vld [vmem:[#allocation7 + $0x48] sm:$0xff]
    %v161 = vld [vmem:[#allocation7 + $0x50] sm:$0xff]
    %v162 = vld [vmem:[#allocation7 + $0x58] sm:$0xff]
    %v163 = vld [vmem:[#allocation7 + $0x60] sm:$0xff]
    %v164 = vld [vmem:[#allocation7 + $0x68] sm:$0xff]
    %v165 = vld [vmem:[#allocation7 + $0x70] sm:$0xff]
    %v166 = vld [vmem:[#allocation7 + $0x78] sm:$0xff]
    %v167 = vld [vmem:[%s4] sm:$0x1]
    %v169 = vperm.slane %v167, 0
    %171 = vmatpush.msra.mxu0 %v166
    %172 = vmatpush.msra.mxu0 %v165
    %173 = vmatpush.msra.mxu0 %v164
    %174 = vmatpush.msra.mxu0 %v163
    %175 = vmatpush.msra.mxu0 %v162
    %176 = vmatpush.msra.mxu0 %v161
    %177 = vmatpush.msra.mxu0 %v160
    %178 = vmatpush.msra.mxu0 %v159
    %179 = vmatpush.msra.mxu0 %v158
    %180 = vmatpush.msra.mxu0 %v157
    %181 = vmatpush.msra.mxu0 %v156
    %182 = vmatpush.msra.mxu0 %v155
    %183 = vmatpush.msra.mxu0 %v154
    %184 = vmatpush.msra.mxu0 %v153
    %185 = vmatpush.msra.mxu0 %v152
    %186 = vmatpush.msra.mxu0 %v151
    %187 = vmatmul.f32.gmra.mxu0 %v150
    %v188 = vpop.f32.mrf.mxu0
    %v189 = vadd.f32 %v169, %v188
    %190 = vdwg.mxu0
    %191 = vst [vmem:[#allocation8] sm:$0xff] %v189
    // Predicated region
    $region34: #{tpu_custom_call.1} parent=1 // pred_check
      _
    $region35: #{tpu_custom_call.1} parent=1 // pred_check_branch
      %193 = sbr.rel (0) target = $region37
    $region36: #{tpu_custom_call.1} parent=1 // pred_region
      %195 = vsyncadd [#allocation4], 0
      %s197 = sshll.u32 [#allocation8], 4
      %s198 = int_to_ptr.vmem [resolvable:$true] %s197
      %s199 = sshll.u32 %s5, 4
      %s200 = int_to_ptr.hbm [resolvable:$true] %s199
      %202 = dma.vmem_to_hbm [thread:$0]  %s198, 128, %s200, [#allocation4]
    $region37: #{tpu_custom_call.1} parent=1 // pred_fallthru
      _
    // Predicated region
    $region38: #{tpu_custom_call.1} parent=1 // pred_check
      _
    $region39: #{tpu_custom_call.1} parent=1 // pred_check_branch
      %204 = sbr.rel (0) target = $region41
    $region40: #{tpu_custom_call.1} parent=1 // pred_region
      %206 = dma.done [#allocation4], 128
    $region41: #{tpu_custom_call.1} parent=1 // pred_fallthru
      _
    %207 = vsyncpa [#allocation3], 1
    %208 = vsyncpa [#allocation6], 1
    %209 = vsyncpa [#allocation4], 1

// kernel: tpu_custom_call.1
$region0: #{tpu_custom_call.1}
  #allocation0 [shape = 'u32[]', space=smem, size = 0x4, offset = 0x4, fixed_abs, tag = 'smem constant byte address 0x4 - core index']
  #allocation1 [shape = 'u32[72,128]{1,0:T(1,128)}', space=vmem, size = 0x9000, scoped, tag = 'internal scratch']
  %s0 = inlined_call_operand.hbm [shape: f32[8,128], index: 0, kind: input, shape index: {}]
  %s1 = inlined_call_operand.hbm [shape: f32[128,128], index: 1, kind: input, shape index: {}]
  %s2 = inlined_call_operand.vmem [shape: f32[1,128], index: 2, kind: input, shape index: {}]
  %s3 = inlined_call_operand.hbm [shape: f32[128,128], index: 3, kind: input, shape index: {}]
  %s4 = inlined_call_operand.vmem [shape: f32[1,128], index: 4, kind: input, shape index: {}]
  %s5 = inlined_call_operand.hbm [shape: f32[8,128], index: 5, kind: output, shape index: {}]
  %s6 = sld [smem:[#allocation0]]
  $region42: #{tpu_custom_call.1} parent=0
    _
  %s8 = ssub.s32 1, %s6
  %s9 = scalar_select 0, %s8, %s6
  $region1: #{tpu_custom_call.1} parent=0
    #allocation2 [shape = 'u8[4096]{0}', space=vmem, size = 0x1000, scoped, tag = 'input window, operand 0, single buffered']
    #allocation3 [shape = 's32[1]{0}', space=sflag, size = 0x4, scoped, tag = 'scoped memory for tpu_custom_call.1']
    #allocation4 [shape = 's32[1]{0}', space=sflag, size = 0x4, scoped, tag = 'scoped memory for tpu_custom_call.1']
    #allocation5 [shape = 'u8[65536]{0}', space=vmem, size = 0x10000, scoped, tag = 'input window, operand 1, single buffered']
    #allocation6 [shape = 's32[1]{0}', space=sflag, size = 0x4, scoped, tag = 'scoped memory for tpu_custom_call.1']
    #allocation7 [shape = 'u8[65536]{0}', space=vmem, size = 0x10000, scoped, tag = 'input window, operand 3, single buffered']
    #allocation8 [shape = 'u8[4096]{0}', space=vmem, size = 0x1000, scoped, tag = 'output window, operand 0, single buffered']
    %10 = vsyncpa [#allocation3], 0
    %11 = vsyncpa [#allocation6], 0
    %12 = vsyncpa [#allocation4], 0
    // Predicated region
    $region2: #{tpu_custom_call.1} parent=1 // pred_check
      _
    $region3: #{tpu_custom_call.1} parent=1 // pred_check_branch
      %14 = sbr.rel (0) target = $region5
    $region4: #{tpu_custom_call.1} parent=1 // pred_region
      %16 = vsyncadd [#allocation3], 0
      %s18 = sshll.u32 %s0, 4
      %s19 = int_to_ptr.hbm [resolvable:$true] %s18
      %s20 = sshll.u32 [#allocation2], 4
      %s21 = int_to_ptr.vmem [resolvable:$true] %s20
      %23 = dma.hbm_to_vmem [thread:$0]  %s19, 128, %s21, [#allocation3]
    $region5: #{tpu_custom_call.1} parent=1 // pred_fallthru
      _
    // Predicated region
    $region6: #{tpu_custom_call.1} parent=1 // pred_check
      _
    $region7: #{tpu_custom_call.1} parent=1 // pred_check_branch
      %25 = sbr.rel (0) target = $region9
    $region8: #{tpu_custom_call.1} parent=1 // pred_region
      %27 = vsyncadd [#allocation6], 0
      %s28 = sshll.u32 %s1, 4
      %s29 = int_to_ptr.hbm [resolvable:$true] %s28
      %s30 = sshll.u32 [#allocation5], 4
      %s31 = int_to_ptr.vmem [resolvable:$true] %s30
      %36 = dma.hbm_to_vmem [thread:$0]  %s29, 2048, %s31, [#allocation6], 128, 128, 8
    $region9: #{tpu_custom_call.1} parent=1 // pred_fallthru
      _
    // Predicated region
    $region10: #{tpu_custom_call.1} parent=1 // pred_check
      _
    $region11: #{tpu_custom_call.1} parent=1 // pred_check_branch
      %38 = sbr.rel (0) target = $region13
    $region12: #{tpu_custom_call.1} parent=1 // pred_region
      _
    $region13: #{tpu_custom_call.1} parent=1 // pred_fallthru
      _
    // Predicated region
    $region14: #{tpu_custom_call.1} parent=1 // pred_check
      _
    $region15: #{tpu_custom_call.1} parent=1 // pred_check_branch
      %40 = sbr.rel (0) target = $region17
    $region16: #{tpu_custom_call.1} parent=1 // pred_region
      %42 = vsyncadd [#allocation6], 0
      %s43 = sshll.u32 %s3, 4
      %s44 = int_to_ptr.hbm [resolvable:$true] %s43
      %s45 = sshll.u32 [#allocation7], 4
      %s46 = int_to_ptr.vmem [resolvable:$true] %s45
      %51 = dma.hbm_to_vmem [thread:$0]  %s44, 2048, %s46, [#allocation6], 128, 128, 8
    $region17: #{tpu_custom_call.1} parent=1 // pred_fallthru
      _
    // Predicated region
    $region18: #{tpu_custom_call.1} parent=1 // pred_check
      _
    $region19: #{tpu_custom_call.1} parent=1 // pred_check_branch
      %53 = sbr.rel (0) target = $region21
    $region20: #{tpu_custom_call.1} parent=1 // pred_region
      _
    $region21: #{tpu_custom_call.1} parent=1 // pred_fallthru
      _
    // Predicated region
    $region22: #{tpu_custom_call.1} parent=1 // pred_check
      _
    $region23: #{tpu_custom_call.1} parent=1 // pred_check_branch
      %55 = sbr.rel (0) target = $region25
    $region24: #{tpu_custom_call.1} parent=1 // pred_region
      %57 = dma.done [#allocation3], 128
    $region25: #{tpu_custom_call.1} parent=1 // pred_fallthru
      _
    // Predicated region
    $region26: #{tpu_custom_call.1} parent=1 // pred_check
      _
    $region27: #{tpu_custom_call.1} parent=1 // pred_check_branch
      %59 = sbr.rel (0) target = $region29
    $region28: #{tpu_custom_call.1} parent=1 // pred_region
      %61 = dma.done [#allocation6], 2048
    $region29: #{tpu_custom_call.1} parent=1 // pred_fallthru
      _
    // Predicated region
    $region30: #{tpu_custom_call.1} parent=1 // pred_check
      _
    $region31: #{tpu_custom_call.1} parent=1 // pred_check_branch
      %63 = sbr.rel (0) target = $region33
    $region32: #{tpu_custom_call.1} parent=1 // pred_region
      %65 = dma.done [#allocation6], 2048
    $region33: #{tpu_custom_call.1} parent=1 // pred_fallthru
      _
    %v66 = vld [vmem:[#allocation5] sm:$0xff]
    %v67 = vld [vmem:[#allocation5 + $0x8] sm:$0xff]
    %v68 = vld [vmem:[#allocation5 + $0x10] sm:$0xff]
    %v69 = vld [vmem:[#allocation5 + $0x18] sm:$0xff]
    %v70 = vld [vmem:[#allocation5 + $0x20] sm:$0xff]
    %v71 = vld [vmem:[#allocation5 + $0x28] sm:$0xff]
    %v72 = vld [vmem:[#allocation5 + $0x30] sm:$0xff]
    %v73 = vld [vmem:[#allocation5 + $0x38] sm:$0xff]
    %v74 = vld [vmem:[#allocation5 + $0x40] sm:$0xff]
    %v75 = vld [vmem:[#allocation5 + $0x48] sm:$0xff]
    %v76 = vld [vmem:[#allocation5 + $0x50] sm:$0xff]
    %v77 = vld [vmem:[#allocation5 + $0x58] sm:$0xff]
    %v78 = vld [vmem:[#allocation5 + $0x60] sm:$0xff]
    %v79 = vld [vmem:[#allocation5 + $0x68] sm:$0xff]
    %v80 = vld [vmem:[#allocation5 + $0x70] sm:$0xff]
    %v81 = vld [vmem:[#allocation5 + $0x78] sm:$0xff]
    %v82 = vld [vmem:[%s2] sm:$0x1]
    %v83 = vld [vmem:[#allocation2] sm:$0xff]
    %v85 = vperm.slane %v82, 0
    %87 = vmatpush.msra.mxu0 %v81
    %88 = vmatpush.msra.mxu0 %v80
    %89 = vmatpush.msra.mxu0 %v79
    %90 = vmatpush.msra.mxu0 %v78
    %91 = vmatpush.msra.mxu0 %v77
    %92 = vmatpush.msra.mxu0 %v76
    %93 = vmatpush.msra.mxu0 %v75
    %94 = vmatpush.msra.mxu0 %v74
    %95 = vmatpush.msra.mxu0 %v73
    %96 = vmatpush.msra.mxu0 %v72
    %97 = vmatpush.msra.mxu0 %v71
    %98 = vmatpush.msra.mxu0 %v70
    %99 = vmatpush.msra.mxu0 %v69
    %100 = vmatpush.msra.mxu0 %v68
    %101 = vmatpush.msra.mxu0 %v67
    %102 = vmatpush.msra.mxu0 %v66
    %103 = vmatmul.f32.gmra.mxu0 %v83
    %v104 = vpop.f32.mrf.mxu0
    %v105 = vadd.f32 %v85, %v104
    %106 = vdwg.mxu0
    %v107 = vmul.f32 %v105, 0.5
    %v108 = vmul.f32 %v105, 0.70710677
    %v109 = vmul.f32 %v108, %v108
    %v110 = vmin.f32 16.0, %v109
    %v111 = vmul.f32 %v110, 2.1237322e-06
    %v112 = vadd.f32 %v111, 0.00028619796
    %v113 = vmul.f32 %v110, %v112
    %v114 = vadd.f32 %v113, 0.0036580483
    %v115 = vmul.f32 %v110, %v114
    %v116 = vadd.f32 %v115, 0.05243302
    %v117 = vmul.f32 %v110, %v116
    %v118 = vadd.f32 %v117, 0.18741608
    %v119 = vmul.f32 %v110, %v118
    %v120 = vadd.f32 %v119, 1.1283791
    %v121 = vmul.f32 %v108, %v120
    %v122 = vmul.f32 %v110, 3.8918573e-05
    %v123 = vadd.f32 %v122, 0.001143296
    %v124 = vmul.f32 %v110, %v123
    %v125 = vadd.f32 %v124, 0.014752088
    %v126 = vmul.f32 %v110, %v125
    %v127 = vadd.f32 %v126, 0.112945676
    %v128 = vmul.f32 %v110, %v127
    %v129 = vadd.f32 %v128, 0.4994258
    %v130 = vmul.f32 %v110, %v129
    %v131 = vadd.f32 %v130, 1.0
    %v132 = vrcp.pop %v131
    %v133 = vmul.f32 %v131, %v132
    %v134 = vsub.f32 1.0, %v133
    %v135 = vmul.f32 %v132, %v134
    %v136 = vadd.f32 %v132, %v135
    %vm137 = vweird.f32 %v131
    %vm138 = vweird.f32 %v132
    %vm139 = vmor %vm137, %vm138
    %v140 = vsel %vm139, %v132, %v136
    %v141 = vand.u32 2147483647, %v131
    %vm142 = vcmp.eq.f32.partialorder %v141, 8.507059e+37
    %v143 = vand.u32 %v131, 2147483648
    %v144 = vor.u32 1.1754944e-38, %v143
    %v145 = vsel %vm142, %v144, %v140
    %v146 = vmul.f32 %v121, %v145
    %v147 = vmin.f32 %v146, 1.0
    %v148 = vmax.f32 %v147, -1.0
    %v149 = vadd.f32 %v148, 1.0
    %v150 = vmul.f32 %v107, %v149
    %v151 = vld [vmem:[#allocation7] sm:$0xff]
    %v152 = vld [vmem:[#allocation7 + $0x8] sm:$0xff]
    %v153 = vld [vmem:[#allocation7 + $0x10] sm:$0xff]
    %v154 = vld [vmem:[#allocation7 + $0x18] sm:$0xff]
    %v155 = vld [vmem:[#allocation7 + $0x20] sm:$0xff]
    %v156 = vld [vmem:[#allocation7 + $0x28] sm:$0xff]
    %v157 = vld [vmem:[#allocation7 + $0x30] sm:$0xff]
    %v158 = vld [vmem:[#allocation7 + $0x38] sm:$0xff]
    %v159 = vld [vmem:[#allocation7 + $0x40] sm:$0xff]
    %v160 = vld [vmem:[#allocation7 + $0x48] sm:$0xff]
    %v161 = vld [vmem:[#allocation7 + $0x50] sm:$0xff]
    %v162 = vld [vmem:[#allocation7 + $0x58] sm:$0xff]
    %v163 = vld [vmem:[#allocation7 + $0x60] sm:$0xff]
    %v164 = vld [vmem:[#allocation7 + $0x68] sm:$0xff]
    %v165 = vld [vmem:[#allocation7 + $0x70] sm:$0xff]
    %v166 = vld [vmem:[#allocation7 + $0x78] sm:$0xff]
    %v167 = vld [vmem:[%s4] sm:$0x1]
    %v169 = vperm.slane %v167, 0
    %171 = vmatpush.msra.mxu0 %v166
    %172 = vmatpush.msra.mxu0 %v165
    %173 = vmatpush.msra.mxu0 %v164
    %174 = vmatpush.msra.mxu0 %v163
    %175 = vmatpush.msra.mxu0 %v162
    %176 = vmatpush.msra.mxu0 %v161
    %177 = vmatpush.msra.mxu0 %v160
    %178 = vmatpush.msra.mxu0 %v159
    %179 = vmatpush.msra.mxu0 %v158
    %180 = vmatpush.msra.mxu0 %v157
    %181 = vmatpush.msra.mxu0 %v156
    %182 = vmatpush.msra.mxu0 %v155
    %183 = vmatpush.msra.mxu0 %v154
    %184 = vmatpush.msra.mxu0 %v153
    %185 = vmatpush.msra.mxu0 %v152
    %186 = vmatpush.msra.mxu0 %v151
    %187 = vmatmul.f32.gmra.mxu0 %v150
    %v188 = vpop.f32.mrf.mxu0
    %v189 = vadd.f32 %v169, %v188
    %190 = vdwg.mxu0
    %191 = vst [vmem:[#allocation8] sm:$0xff] %v189
    // Predicated region
    $region34: #{tpu_custom_call.1} parent=1 // pred_check
      _
    $region35: #{tpu_custom_call.1} parent=1 // pred_check_branch
      %193 = sbr.rel (0) target = $region37
    $region36: #{tpu_custom_call.1} parent=1 // pred_region
      %195 = vsyncadd [#allocation4], 0
      %s197 = sshll.u32 [#allocation8], 4
      %s198 = int_to_ptr.vmem [resolvable:$true] %s197
      %s199 = sshll.u32 %s5, 4
      %s200 = int_to_ptr.hbm [resolvable:$true] %s199
      %202 = dma.vmem_to_hbm [thread:$0]  %s198, 128, %s200, [#allocation4]
    $region37: #{tpu_custom_call.1} parent=1 // pred_fallthru
      _
    // Predicated region
    $region38: #{tpu_custom_call.1} parent=1 // pred_check
      _
    $region39: #{tpu_custom_call.1} parent=1 // pred_check_branch
      %204 = sbr.rel (0) target = $region41
    $region40: #{tpu_custom_call.1} parent=1 // pred_region
      %206 = dma.done [#allocation4], 128
    $region41: #{tpu_custom_call.1} parent=1 // pred_fallthru
      _
    %207 = vsyncpa [#allocation3], 1
    %208 = vsyncpa [#allocation6], 1
    %209 = vsyncpa [#allocation4], 1

</llo_original>
